<compile_context>
chip_gen: v6e
topology: v6e:2x2x1
jax: 0.10.0
libtpu: 0.0.40
codegen_flags: <defaults>
</compile_context>

<pallas_src>
import functools

import jax
import jax.numpy as jnp
from jax import lax
from jax.experimental import pallas as pl
from jax.experimental.pallas import tpu as pltpu


def _round_up(n, m):
    return ((n + m - 1) // m) * m


def decoder_kernel(xf_ref, sel_ref, w1_ref, b1_ref, w2_ref, b2_ref, w3_ref,
                   b3_ref, recon_ref, idx_ref, *, num_classes, vec_len):
    C, V = num_classes, vec_len
    xf = xf_ref[...].astype(jnp.float32)               # (TB, C*V)
    TB, CV = xf.shape

    # squared capsule norms via the precomputed (CV, C) selector;
    # sqrt/softmax skipped (monotone -> same argmax).
    classes2 = jnp.dot(xf * xf, sel_ref[...],
                       preferred_element_type=jnp.float32)        # (TB, C)

    # argmax over classes, first-occurrence tie-break (== torch.max).
    maxv = jnp.max(classes2, axis=1, keepdims=True)
    iota_c = lax.broadcasted_iota(jnp.int32, (TB, C), 1)
    idx = jnp.min(jnp.where(classes2 >= maxv, iota_c, C),
                  axis=1, keepdims=True)                           # (TB, 1)
    idx_ref[...] = idx.astype(idx_ref.dtype)           # tiny int32 writeback

    def col_to_class(col):
        if V & (V - 1) == 0:                            # power of two -> shift
            return col >> (V.bit_length() - 1)
        return col // V

    # zero out capsule vectors of the non-winning classes (flat view).
    col_iota = lax.broadcasted_iota(jnp.int32, (TB, CV), 1)
    h = xf * (col_to_class(col_iota) == idx).astype(jnp.float32)

    # Linear -> ReLU -> Linear -> ReLU -> Linear -> Sigmoid (f32 accumulate).
    w_dt = w1_ref.dtype
    h = jnp.dot(h.astype(w_dt), w1_ref[...],
                preferred_element_type=jnp.float32) + b1_ref[...]
    h = jnp.maximum(h, 0.0)
    h = jnp.dot(h.astype(w_dt), w2_ref[...],
                preferred_element_type=jnp.float32) + b2_ref[...]
    h = jnp.maximum(h, 0.0)
    o = jnp.dot(h.astype(w_dt), w3_ref[...],
                preferred_element_type=jnp.float32) + b3_ref[...]
    recon_ref[...] = jax.nn.sigmoid(o).astype(recon_ref.dtype)


def prepare_decoder_params(params, *, num_classes, vec_len,
                           matmul_dtype=jnp.float32):
    """One-time weight padding / casting + class-selector build.

    Hoisted off the per-forward hot path (per-call padding rivals kernel time
    at small batch).  matmul_dtype=jnp.bfloat16 is recommended on ALL TPU
    generations (v5e/v6e/v7x MXUs are bf16-native; f32 operands are
    multi-pass); accumulation stays f32 in-kernel.  Lane dims are zero-padded
    to multiples of 128 so every matmul output / store is lane-dense; the
    padding is all-zero so the math on the real columns is unchanged.
    """
    w1, b1, w2, b2, w3, b3 = params
    in_dim = w1.shape[0]
    assert in_dim == num_classes * vec_len
    H1, H2, out_dim = w1.shape[1], w2.shape[1], w3.shape[1]
    H1p, H2p, OPp = _round_up(H1, 128), _round_up(H2, 128), _round_up(out_dim, 128)

    w1p = jnp.zeros((in_dim, H1p), jnp.float32).at[:, :H1].set(w1).astype(matmul_dtype)
    b1p = jnp.zeros((1, H1p), jnp.float32).at[:, :H1].set(b1.reshape(1, H1))
    w2p = jnp.zeros((H1p, H2p), jnp.float32).at[:H1, :H2].set(w2).astype(matmul_dtype)
    b2p = jnp.zeros((1, H2p), jnp.float32).at[:, :H2].set(b2.reshape(1, H2))
    w3p = jnp.zeros((H2p, OPp), jnp.float32).at[:H2, :out_dim].set(w3).astype(matmul_dtype)
    b3p = jnp.zeros((1, OPp), jnp.float32).at[:, :out_dim].set(b3.reshape(1, out_dim))

    # (C*V, C) selector: sel[j, c] = 1 iff flat column j belongs to class c.
    sel = jax.nn.one_hot(jnp.arange(in_dim) // vec_len, num_classes,
                         dtype=jnp.float32)

    return dict(sel=sel, w1=w1p, b1=b1p, w2=w2p, b2=b2p, w3=w3p, b3=b3p,
                num_classes=num_classes, vec_len=vec_len, out_dim=out_dim)


def decoder_forward(x, prepared, *, block_b=1024, out_dtype=jnp.float32):
    """x: (B, num_classes, input_vector_length), f32 or bf16.

    Returns (reconstructions (B, image_size**2) out_dtype, y (B, C) float32).
    Pass x as bf16 and/or out_dtype=jnp.bfloat16 to halve activation DMA when
    the consumer tolerates it (loosen tolerances accordingly).
    """
    sel = prepared["sel"]
    w1p, b1p = prepared["w1"], prepared["b1"]
    w2p, b2p = prepared["w2"], prepared["b2"]
    w3p, b3p = prepared["w3"], prepared["b3"]
    C, V, out_dim = prepared["num_classes"], prepared["vec_len"], prepared["out_dim"]

    B = x.shape[0]
    assert x.shape[1] == C and x.shape[2] == V
    in_dim = C * V
    H1p, H2p, OPp = w1p.shape[1], w2p.shape[1], w3p.shape[1]

    # Batch tile: sublane-aligned, sized from the actual batch; keep >=2 grid
    # steps when the batch allows so v7x's two TensorCores both get work.
    b_aligned = _round_up(max(B, 1), 8)
    TB = min(_round_up(block_b, 8), b_aligned)
    if TB >= b_aligned and b_aligned > 8:
        TB = _round_up(b_aligned // 2, 8)
    B_pad = _round_up(B, TB)

    xf = x.reshape(B, in_dim)                          # glue reshape
    if B_pad != B:
        xf = jnp.pad(xf, ((0, B_pad - B), (0, 0)))     # glue padding (zeros)

    # Rough per-step VMEM estimate; bump the scoped limit only when the tile
    # would exceed v5e's 16 MiB default (cap below v7x's 64 MiB physical).
    wb = jnp.dtype(w1p.dtype).itemsize
    xb = jnp.dtype(xf.dtype).itemsize
    ob = jnp.dtype(out_dtype).itemsize
    est = (2 * TB * (in_dim * xb + OPp * ob + 4)                       # I/O tiles (x2 buf)
           + 2 * (in_dim * H1p + H1p * H2p + H2p * OPp) * wb           # resident weights
           + 4 * TB * (3 * in_dim + 2 * H1p + 2 * H2p + 2 * OPp))      # f32 temporaries
    cparams = {"dimension_semantics": ("parallel",)}
    if est > 16 * 1024 * 1024:
        cparams["vmem_limit_bytes"] = min(2 * int(est), 60 * 1024 * 1024)

    kernel = functools.partial(decoder_kernel, num_classes=C, vec_len=V)

    def resident(arr):                                 # stays in VMEM across steps
        return pl.BlockSpec(arr.shape, lambda i: (0, 0))

    recon_p, idx_p = pl.pallas_call(
        kernel,
        grid=(B_pad // TB,),
        in_specs=[pl.BlockSpec((TB, in_dim), lambda i: (i, 0)),
                  resident(sel),
                  resident(w1p), resident(b1p),
                  resident(w2p), resident(b2p),
                  resident(w3p), resident(b3p)],
        out_specs=(pl.BlockSpec((TB, OPp), lambda i: (i, 0)),
                   pl.BlockSpec((TB, 1), lambda i: (i, 0))),
        out_shape=(jax.ShapeDtypeStruct((B_pad, OPp), out_dtype),
                   jax.ShapeDtypeStruct((B_pad, 1), jnp.int32)),
        compiler_params=pltpu.CompilerParams(**cparams),
    )(xf, sel, w1p, b1p, w2p, b2p, w3p, b3p)

    # y rebuilt from the tiny idx output (wrapper glue, no padded-f32 DMA).
    y = jax.nn.one_hot(idx_p[:B, 0], C, dtype=jnp.float32)
    return recon_p[:B, :out_dim], y


def decoder_reference(x, params):
    """Plain-JAX reference mirroring the PyTorch forward exactly."""
    w1, b1, w2, b2, w3, b3 = params
    classes = jnp.sqrt(jnp.sum(x ** 2, axis=-1))
    sm = jax.nn.softmax(classes, axis=-1)
    idx = jnp.argmax(sm, axis=1)
    y = jax.nn.one_hot(idx, x.shape[1], dtype=jnp.float32)
    xm = x * y[:, :, None]
    xf = xm.reshape(x.shape[0], -1)
    h = jax.nn.relu(xf @ w1 + b1)
    h = jax.nn.relu(h @ w2 + b2)
    return jax.nn.sigmoid(h @ w3 + b3), y


def make_params(key, input_dim, hidden_dim, image_size):
    """Deterministic synthetic weights (shapes from the module __init__)."""
    k1, k2, k3 = jax.random.split(key, 3)
    out_dim = image_size ** 2
    w1 = 0.1 * jax.random.normal(k1, (input_dim, hidden_dim), jnp.float32)
    b1 = jnp.zeros((1, hidden_dim), jnp.float32) + 0.01
    w2 = 0.1 * jax.random.normal(k2, (hidden_dim, hidden_dim * 2), jnp.float32)
    b2 = jnp.zeros((1, hidden_dim * 2), jnp.float32) + 0.01
    w3 = 0.1 * jax.random.normal(k3, (hidden_dim * 2, out_dim), jnp.float32)
    b3 = jnp.zeros((1, out_dim), jnp.float32) + 0.01
    return (w1, b1, w2, b2, w3, b3)


if __name__ == "__main__":
    # Small, module-consistent shapes:
    # batch=2, num_classes=4, input_vector_length=8, hidden_dim=32, image_size=16
    B, num_classes, vec_len = 2, 4, 8
    hidden_dim, image_size = 32, 16
    input_dim = num_classes * vec_len

    key = jax.random.PRNGKey(0)
    kx, kp = jax.random.split(key)
    x = jax.random.normal(kx, (B, num_classes, vec_len), jnp.float32)
    params = make_params(kp, input_dim, hidden_dim, image_size)

    # One-time prep (padding / cast / selector) hoisted off the hot path.
    prepared = prepare_decoder_params(params, num_classes=num_classes,
                                      vec_len=vec_len,
                                      matmul_dtype=jnp.float32)

    recon, y = decoder_forward(x, prepared)
    recon = jax.block_until_ready(recon)
    y = jax.block_until_ready(y)

    recon_ref, y_ref = decoder_reference(x, params)
    assert recon.shape == (B, image_size ** 2) and y.shape == (B, num_classes)
    assert jnp.allclose(y, y_ref)
    assert jnp.allclose(recon, recon_ref, atol=1e-5, rtol=1e-5)

    print("KERNEL_OK")
</pallas_src>

<mosaic_0001>
module attributes {stable_mosaic.version = 11 : i64} {
  func.func @decoder_kernel(%arg0: i32, %arg1: memref<8x32xf32, #tpu.memory_space<vmem>>, %arg2: memref<32x4xf32, #tpu.memory_space<vmem>>, %arg3: memref<32x128xf32, #tpu.memory_space<vmem>>, %arg4: memref<1x128xf32, #tpu.memory_space<vmem>>, %arg5: memref<128x128xf32, #tpu.memory_space<vmem>>, %arg6: memref<1x128xf32, #tpu.memory_space<vmem>>, %arg7: memref<128x256xf32, #tpu.memory_space<vmem>>, %arg8: memref<1x256xf32, #tpu.memory_space<vmem>>, %arg9: memref<8x256xf32, #tpu.memory_space<vmem>>, %arg10: memref<8x1xi32, #tpu.memory_space<vmem>>) attributes {dimension_semantics = [#tpu.dimension_semantics<parallel>], iteration_bounds = array<i64: 1>, scalar_prefetch = 0 : i64, scratch_operands = 0 : i64, tpu.core_type = #tpu.core_type<tc>, window_params = [{transform_indices = @transform_0, window_bounds = array<i64: 8, 32>}, {pipeline_mode = #tpu.pipeline_mode<synchronous>, transform_indices = @transform_1, window_bounds = array<i64: 32, 4>}, {pipeline_mode = #tpu.pipeline_mode<synchronous>, transform_indices = @transform_2, window_bounds = array<i64: 32, 128>}, {pipeline_mode = #tpu.pipeline_mode<synchronous>, transform_indices = @transform_3, window_bounds = array<i64: 1, 128>}, {pipeline_mode = #tpu.pipeline_mode<synchronous>, transform_indices = @transform_4, window_bounds = array<i64: 128, 128>}, {pipeline_mode = #tpu.pipeline_mode<synchronous>, transform_indices = @transform_5, window_bounds = array<i64: 1, 128>}, {pipeline_mode = #tpu.pipeline_mode<synchronous>, transform_indices = @transform_6, window_bounds = array<i64: 128, 256>}, {pipeline_mode = #tpu.pipeline_mode<synchronous>, transform_indices = @transform_7, window_bounds = array<i64: 1, 256>}, {transform_indices = @transform_8, window_bounds = array<i64: 8, 256>}, {transform_indices = @transform_9, window_bounds = array<i64: 8, 1>}]} {
    %c0 = arith.constant 0 : index
    %c0_0 = arith.constant 0 : index
    %0 = vector.load %arg1[%c0, %c0_0] : memref<8x32xf32, #tpu.memory_space<vmem>>, vector<8x32xf32>
    %1 = arith.mulf %0, %0 : vector<8x32xf32>
    %c0_1 = arith.constant 0 : index
    %c0_2 = arith.constant 0 : index
    %2 = vector.load %arg2[%c0_1, %c0_2] : memref<32x4xf32, #tpu.memory_space<vmem>>, vector<32x4xf32>
    %cst = arith.constant dense<0.000000e+00> : vector<8x4xf32>
    %3 = tpu.matmul %1, %2, %cst {dimension_numbers = #tpu.dot_dimension_numbers<[1], [0], [0], [1], [0, 0, 1, 1], [], []>} : vector<8x32xf32>, vector<32x4xf32>, vector<8x4xf32> -> vector<8x4xf32>
    %cst_3 = arith.constant dense<0xFF800000> : vector<8xf32>
    %4 = vector.multi_reduction <maximumf>, %3, %cst_3 [1] : vector<8x4xf32> to vector<8xf32>
    %5 = vector.shape_cast %4 : vector<8xf32> to vector<8x1xf32>
    %6 = tpu.iota {dimensions = array<i32: 1>} : vector<8x4xi32>
    %7 = vector.broadcast %5 : vector<8x1xf32> to vector<8x4xf32>
    %8 = arith.cmpf oge, %3, %7 : vector<8x4xf32>
    %c4_i32 = arith.constant 4 : i32
    %9 = vector.broadcast %c4_i32 : i32 to vector<8x4xi32>
    %10 = arith.select %8, %6, %9 : vector<8x4xi1>, vector<8x4xi32>
    %cst_4 = arith.constant dense<2147483647> : vector<8xi32>
    %11 = vector.multi_reduction <minsi>, %10, %cst_4 [1] : vector<8x4xi32> to vector<8xi32>
    %12 = vector.shape_cast %11 : vector<8xi32> to vector<8x1xi32>
    %c0_5 = arith.constant 0 : index
    %c0_6 = arith.constant 0 : index
    %13 = vector.load %arg10[%c0_5, %c0_6] : memref<8x1xi32, #tpu.memory_space<vmem>>, vector<8x1xi32>
    tpu.vector_store %arg10[%c0_5, %c0_6], %12 {strides = array<i32>} : memref<8x1xi32, #tpu.memory_space<vmem>>, vector<8x1xi32>,
    %14 = tpu.iota {dimensions = array<i32: 1>} : vector<8x32xi32>
    %c3_i32 = arith.constant 3 : i32
    %15 = vector.broadcast %c3_i32 : i32 to vector<8x32xi32>
    %16 = arith.shrsi %14, %15 : vector<8x32xi32>
    %17 = vector.broadcast %12 : vector<8x1xi32> to vector<8x32xi32>
    %18 = arith.cmpi eq, %16, %17 : vector<8x32xi32>
    %19 = arith.extui %18 : vector<8x32xi1> to vector<8x32xi32>
    %20 = arith.sitofp %19 : vector<8x32xi32> to vector<8x32xf32>
    %21 = arith.mulf %0, %20 : vector<8x32xf32>
    %c0_7 = arith.constant 0 : index
    %c0_8 = arith.constant 0 : index
    %22 = vector.load %arg3[%c0_7, %c0_8] : memref<32x128xf32, #tpu.memory_space<vmem>>, vector<32x128xf32>
    %cst_9 = arith.constant dense<0.000000e+00> : vector<8x128xf32>
    %23 = tpu.matmul %21, %22, %cst_9 {dimension_numbers = #tpu.dot_dimension_numbers<[1], [0], [0], [1], [0, 0, 1, 1], [], []>} : vector<8x32xf32>, vector<32x128xf32>, vector<8x128xf32> -> vector<8x128xf32>
    %c0_10 = arith.constant 0 : index
    %c0_11 = arith.constant 0 : index
    %24 = vector.load %arg4[%c0_10, %c0_11] : memref<1x128xf32, #tpu.memory_space<vmem>>, vector<1x128xf32>
    %25 = vector.broadcast %24 : vector<1x128xf32> to vector<8x128xf32>
    %26 = arith.addf %23, %25 : vector<8x128xf32>
    %cst_12 = arith.constant 0.000000e+00 : f32
    %27 = vector.broadcast %cst_12 : f32 to vector<8x128xf32>
    %28 = arith.maximumf %26, %27 : vector<8x128xf32>
    %c0_13 = arith.constant 0 : index
    %c0_14 = arith.constant 0 : index
    %29 = vector.load %arg5[%c0_13, %c0_14] : memref<128x128xf32, #tpu.memory_space<vmem>>, vector<128x128xf32>
    %cst_15 = arith.constant dense<0.000000e+00> : vector<8x128xf32>
    %30 = tpu.matmul %28, %29, %cst_15 {dimension_numbers = #tpu.dot_dimension_numbers<[1], [0], [0], [1], [0, 0, 1, 1], [], []>} : vector<8x128xf32>, vector<128x128xf32>, vector<8x128xf32> -> vector<8x128xf32>
    %c0_16 = arith.constant 0 : index
    %c0_17 = arith.constant 0 : index
    %31 = vector.load %arg6[%c0_16, %c0_17] : memref<1x128xf32, #tpu.memory_space<vmem>>, vector<1x128xf32>
    %32 = vector.broadcast %31 : vector<1x128xf32> to vector<8x128xf32>
    %33 = arith.addf %30, %32 : vector<8x128xf32>
    %cst_18 = arith.constant 0.000000e+00 : f32
    %34 = vector.broadcast %cst_18 : f32 to vector<8x128xf32>
    %35 = arith.maximumf %33, %34 : vector<8x128xf32>
    %c0_19 = arith.constant 0 : index
    %c0_20 = arith.constant 0 : index
    %36 = vector.load %arg7[%c0_19, %c0_20] : memref<128x256xf32, #tpu.memory_space<vmem>>, vector<128x256xf32>
    %cst_21 = arith.constant dense<0.000000e+00> : vector<8x256xf32>
    %37 = tpu.matmul %35, %36, %cst_21 {dimension_numbers = #tpu.dot_dimension_numbers<[1], [0], [0], [1], [0, 0, 1, 1], [], []>} : vector<8x128xf32>, vector<128x256xf32>, vector<8x256xf32> -> vector<8x256xf32>
    %c0_22 = arith.constant 0 : index
    %c0_23 = arith.constant 0 : index
    %38 = vector.load %arg8[%c0_22, %c0_23] : memref<1x256xf32, #tpu.memory_space<vmem>>, vector<1x256xf32>
    %39 = vector.broadcast %38 : vector<1x256xf32> to vector<8x256xf32>
    %40 = arith.addf %37, %39 : vector<8x256xf32>
    %41 = arith.negf %40 : vector<8x256xf32>
    %42 = math.exp %41 : vector<8x256xf32>
    %cst_24 = arith.constant 1.000000e+00 : f32
    %43 = vector.broadcast %cst_24 : f32 to vector<8x256xf32>
    %44 = arith.addf %43, %42 : vector<8x256xf32>
    %45 = arith.divf %43, %44 : vector<8x256xf32>
    %c0_25 = arith.constant 0 : index
    %c0_26 = arith.constant 0 : index
    %46 = vector.load %arg9[%c0_25, %c0_26] : memref<8x256xf32, #tpu.memory_space<vmem>>, vector<8x256xf32>
    tpu.vector_store %arg9[%c0_25, %c0_26], %45 {strides = array<i32>} : memref<8x256xf32, #tpu.memory_space<vmem>>, vector<8x256xf32>,
    return
  }
  func.func @transform_0(%arg0: i32) -> (i32, i32) {
    %c0_i32 = arith.constant 0 : i32
    %c0_i32_0 = arith.constant 0 : i32
    return %arg0, %c0_i32 : i32, i32
  }
  func.func @transform_1(%arg0: i32) -> (i32, i32) {
    %c0_i32 = arith.constant 0 : i32
    %c0_i32_0 = arith.constant 0 : i32
    %c0_i32_1 = arith.constant 0 : i32
    return %c0_i32, %c0_i32_0 : i32, i32
  }
  func.func @transform_2(%arg0: i32) -> (i32, i32) {
    %c0_i32 = arith.constant 0 : i32
    %c0_i32_0 = arith.constant 0 : i32
    %c0_i32_1 = arith.constant 0 : i32
    return %c0_i32, %c0_i32_0 : i32, i32
  }
  func.func @transform_3(%arg0: i32) -> (i32, i32) {
    %c0_i32 = arith.constant 0 : i32
    %c0_i32_0 = arith.constant 0 : i32
    %c0_i32_1 = arith.constant 0 : i32
    return %c0_i32, %c0_i32_0 : i32, i32
  }
  func.func @transform_4(%arg0: i32) -> (i32, i32) {
    %c0_i32 = arith.constant 0 : i32
    %c0_i32_0 = arith.constant 0 : i32
    %c0_i32_1 = arith.constant 0 : i32
    return %c0_i32, %c0_i32_0 : i32, i32
  }
  func.func @transform_5(%arg0: i32) -> (i32, i32) {
    %c0_i32 = arith.constant 0 : i32
    %c0_i32_0 = arith.constant 0 : i32
    %c0_i32_1 = arith.constant 0 : i32
    return %c0_i32, %c0_i32_0 : i32, i32
  }
  func.func @transform_6(%arg0: i32) -> (i32, i32) {
    %c0_i32 = arith.constant 0 : i32
    %c0_i32_0 = arith.constant 0 : i32
    %c0_i32_1 = arith.constant 0 : i32
    return %c0_i32, %c0_i32_0 : i32, i32
  }
  func.func @transform_7(%arg0: i32) -> (i32, i32) {
    %c0_i32 = arith.constant 0 : i32
    %c0_i32_0 = arith.constant 0 : i32
    %c0_i32_1 = arith.constant 0 : i32
    return %c0_i32, %c0_i32_0 : i32, i32
  }
  func.func @transform_8(%arg0: i32) -> (i32, i32) {
    %c0_i32 = arith.constant 0 : i32
    %c0_i32_0 = arith.constant 0 : i32
    return %arg0, %c0_i32 : i32, i32
  }
  func.func @transform_9(%arg0: i32) -> (i32, i32) {
    %c0_i32 = arith.constant 0 : i32
    %c0_i32_0 = arith.constant 0 : i32
    return %arg0, %c0_i32 : i32, i32
  }
}

</mosaic_0001>

<llo_original>
// kernel: tpu_custom_call.1
$region0: #{tpu_custom_call.1}
  #allocation0 [shape = 'u32[]', space=smem, size = 0x4, offset = 0x4, fixed_abs, tag = 'smem constant byte address 0x4 - core index']
  #allocation1 [shape = 'u32[144,128]{1,0:T(1,128)}', space=vmem, size = 0x12000, scoped, tag = 'internal scratch']
  %s0 = inlined_call_operand.hbm [shape: f32[8,32], index: 0, kind: input, shape index: {}]
  %s1 = inlined_call_operand.vmem [shape: f32[32,4], index: 1, kind: input, shape index: {}]
  %s2 = inlined_call_operand.vmem [shape: f32[32,128], index: 2, kind: input, shape index: {}]
  %s3 = inlined_call_operand.vmem [shape: f32[1,128], index: 3, kind: input, shape index: {}]
  %s4 = inlined_call_operand.hbm [shape: f32[128,128], index: 4, kind: input, shape index: {}]
  %s5 = inlined_call_operand.vmem [shape: f32[1,128], index: 5, kind: input, shape index: {}]
  %s6 = inlined_call_operand.hbm [shape: f32[128,256], index: 6, kind: input, shape index: {}]
  %s7 = inlined_call_operand.vmem [shape: f32[1,256], index: 7, kind: input, shape index: {}]
  %s8 = inlined_call_operand.hbm [shape: f32[8,256], index: 8, kind: output, shape index: {0}]
  %s9 = inlined_call_operand.vmem [shape: s32[8,1], index: 9, kind: output, shape index: {1}]
  %10 = xla_tuple %s8, %s9
  %s11 = sld [smem:[#allocation0]]
  $region62: #{tpu_custom_call.1} parent=0
    _
  %s13 = ssub.s32 1, %s11
  %s14 = scalar_select 0, %s13, %s11
  $region1: #{tpu_custom_call.1} parent=0
    #allocation2 [shape = 'u8[4096]{0}', space=vmem, size = 0x1000, scoped, tag = 'input window, operand 0, single buffered']
    #allocation3 [shape = 's32[1]{0}', space=sflag, size = 0x4, scoped, tag = 'scoped memory for tpu_custom_call.1']
    #allocation4 [shape = 's32[1]{0}', space=sflag, size = 0x4, scoped, tag = 'scoped memory for tpu_custom_call.1']
    #allocation5 [shape = 'u8[65536]{0}', space=vmem, size = 0x10000, scoped, tag = 'input window, operand 4, single buffered']
    #allocation6 [shape = 's32[1]{0}', space=sflag, size = 0x4, scoped, tag = 'scoped memory for tpu_custom_call.1']
    #allocation7 [shape = 'u8[131072]{0}', space=vmem, size = 0x20000, scoped, tag = 'input window, operand 6, single buffered']
    #allocation8 [shape = 'u8[8192]{0}', space=vmem, size = 0x2000, scoped, tag = 'output window, operand 0, single buffered']
    %15 = vsyncpa [#allocation3], 0
    %16 = vsyncpa [#allocation6], 0
    %17 = vsyncpa [#allocation4], 0
    // Predicated region
    $region2: #{tpu_custom_call.1} parent=1 // pred_check
      _
    $region3: #{tpu_custom_call.1} parent=1 // pred_check_branch
      %19 = sbr.rel (0) target = $region5
    $region4: #{tpu_custom_call.1} parent=1 // pred_region
      %s21 = ssub.s32 128, 128
      %22 = vsyncadd [#allocation3], %s21
      %s24 = sshll.u32 [#allocation2], 4
      %s25 = int_to_ptr.vmem [resolvable:$true] %s24
      %27 = dma.hbm_to_vmem [thread:$0]  %s0, 128, %s25, [#allocation3]
    $region5: #{tpu_custom_call.1} parent=1 // pred_fallthru
      _
    // Predicated region
    $region6: #{tpu_custom_call.1} parent=1 // pred_check
      _
    $region7: #{tpu_custom_call.1} parent=1 // pred_check_branch
      %29 = sbr.rel (0) target = $region9
    $region8: #{tpu_custom_call.1} parent=1 // pred_region
      _
    $region9: #{tpu_custom_call.1} parent=1 // pred_fallthru
      _
    // Predicated region
    $region10: #{tpu_custom_call.1} parent=1 // pred_check
      _
    $region11: #{tpu_custom_call.1} parent=1 // pred_check_branch
      %31 = sbr.rel (0) target = $region13
    $region12: #{tpu_custom_call.1} parent=1 // pred_region
      _
    $region13: #{tpu_custom_call.1} parent=1 // pred_fallthru
      _
    // Predicated region
    $region14: #{tpu_custom_call.1} parent=1 // pred_check
      _
    $region15: #{tpu_custom_call.1} parent=1 // pred_check_branch
      %33 = sbr.rel (0) target = $region17
    $region16: #{tpu_custom_call.1} parent=1 // pred_region
      _
    $region17: #{tpu_custom_call.1} parent=1 // pred_fallthru
      _
    // Predicated region
    $region18: #{tpu_custom_call.1} parent=1 // pred_check
      _
    $region19: #{tpu_custom_call.1} parent=1 // pred_check_branch
      %35 = sbr.rel (0) target = $region21
    $region20: #{tpu_custom_call.1} parent=1 // pred_region
      %s37 = ssub.s32 2048, 2048
      %38 = vsyncadd [#allocation6], %s37
      %s39 = sshll.u32 [#allocation5], 4
      %s40 = int_to_ptr.vmem [resolvable:$true] %s39
      %45 = dma.hbm_to_vmem [thread:$0]  %s4, 2048, %s40, [#allocation6], 128, 128, 8
    $region21: #{tpu_custom_call.1} parent=1 // pred_fallthru
      _
    // Predicated region
    $region22: #{tpu_custom_call.1} parent=1 // pred_check
      _
    $region23: #{tpu_custom_call.1} parent=1 // pred_check_branch
      %47 = sbr.rel (0) target = $region25
    $region24: #{tpu_custom_call.1} parent=1 // pred_region
      _
    $region25: #{tpu_custom_call.1} parent=1 // pred_fallthru
      _
    // Predicated region
    $region26: #{tpu_custom_call.1} parent=1 // pred_check
      _
    $region27: #{tpu_custom_call.1} parent=1 // pred_check_branch
      %49 = sbr.rel (0) target = $region29
    $region28: #{tpu_custom_call.1} parent=1 // pred_region
      %s51 = ssub.s32 4096, 4096
      %52 = vsyncadd [#allocation6], %s51
      %s53 = sshll.u32 [#allocation7], 4
      %s54 = int_to_ptr.vmem [resolvable:$true] %s53
      %59 = dma.hbm_to_vmem [thread:$0]  %s6, 4096, %s54, [#allocation6], 256, 256, 16
    $region29: #{tpu_custom_call.1} parent=1 // pred_fallthru
      _
    // Predicated region
    $region30: #{tpu_custom_call.1} parent=1 // pred_check
      _
    $region31: #{tpu_custom_call.1} parent=1 // pred_check_branch
      %61 = sbr.rel (0) target = $region33
    $region32: #{tpu_custom_call.1} parent=1 // pred_region
      _
    $region33: #{tpu_custom_call.1} parent=1 // pred_fallthru
      _
    // Predicated region
    $region34: #{tpu_custom_call.1} parent=1 // pred_check
      _
    $region35: #{tpu_custom_call.1} parent=1 // pred_check_branch
      %63 = sbr.rel (0) target = $region37
    $region36: #{tpu_custom_call.1} parent=1 // pred_region
      %64 = dma.done [#allocation3], 128
    $region37: #{tpu_custom_call.1} parent=1 // pred_fallthru
      _
    // Predicated region
    $region38: #{tpu_custom_call.1} parent=1 // pred_check
      _
    $region39: #{tpu_custom_call.1} parent=1 // pred_check_branch
      %66 = sbr.rel (0) target = $region41
    $region40: #{tpu_custom_call.1} parent=1 // pred_region
      %67 = dma.done [#allocation6], 2048
    $region41: #{tpu_custom_call.1} parent=1 // pred_fallthru
      _
    // Predicated region
    $region42: #{tpu_custom_call.1} parent=1 // pred_check
      _
    $region43: #{tpu_custom_call.1} parent=1 // pred_check_branch
      %69 = sbr.rel (0) target = $region45
    $region44: #{tpu_custom_call.1} parent=1 // pred_region
      %70 = dma.done [#allocation6], 4096
    $region45: #{tpu_custom_call.1} parent=1 // pred_fallthru
      _
    %v71 = vld [vmem:[#allocation2] sm:$0xff]
    %v72 = vmul.f32 %v71, %v71
    %v73 = vld [vmem:[%s1] sm:$0xff]
    %v74 = vld [vmem:[%s1 + $0x8] sm:$0xff]
    %v75 = vld [vmem:[%s1 + $0x10] sm:$0xff]
    %v76 = vld [vmem:[%s1 + $0x18] sm:$0xff]
    %vm77 = vcmask 261120
    %v79 = vsel %vm77, %v72, 0
    %81 = vmatprep.subr.mxu0 0.0
    %82 = vmatpush1.msra.mxu0 0.0
    %83 = vmatprep.subr.mxu0 0.0
    %84 = vmatpush1.msra.mxu0 0.0
    %85 = vmatprep.subr.mxu0 0.0
    %86 = vmatpush1.msra.mxu0 0.0
    %87 = vmatprep.subr.mxu0 0.0
    %88 = vmatpush1.msra.mxu0 0.0
    %89 = vmatprep.subr.mxu0 0.0
    %90 = vmatpush1.msra.mxu0 0.0
    %91 = vmatprep.subr.mxu0 0.0
    %92 = vmatpush1.msra.mxu0 0.0
    %93 = vmatprep.subr.mxu0 0.0
    %94 = vmatpush1.msra.mxu0 0.0
    %95 = vmatprep.subr.mxu0 0.0
    %96 = vmatpush1.msra.mxu0 0.0
    %97 = vmatprep.subr.mxu0 0.0
    %98 = vmatpush1.msra.mxu0 0.0
    %99 = vmatprep.subr.mxu0 0.0
    %100 = vmatpush1.msra.mxu0 0.0
    %101 = vmatprep.subr.mxu0 0.0
    %102 = vmatpush1.msra.mxu0 0.0
    %103 = vmatprep.subr.mxu0 0.0
    %104 = vmatpush1.msra.mxu0 0.0
    %105 = vmatprep.subr.mxu0 0.0
    %106 = vmatpush1.msra.mxu0 %v76
    %107 = vmatprep.subr.mxu0 0.0
    %108 = vmatpush1.msra.mxu0 %v75
    %109 = vmatprep.subr.mxu0 0.0
    %110 = vmatpush1.msra.mxu0 %v74
    %111 = vmatprep.subr.mxu0 0.0
    %112 = vmatpush1.msra.mxu0 %v73
    %113 = vmatprep.subr.mxu0 0.0
    %114 = vmatpush2.msra.mxu0 0.0
    %115 = vmatprep.subr.mxu0 0.0
    %116 = vmatpush2.msra.mxu0 0.0
    %117 = vmatprep.subr.mxu0 0.0
    %118 = vmatpush2.msra.mxu0 0.0
    %119 = vmatprep.subr.mxu0 0.0
    %120 = vmatpush2.msra.mxu0 0.0
    %121 = vmatprep.subr.mxu0 0.0
    %122 = vmatpush2.msra.mxu0 0.0
    %123 = vmatprep.subr.mxu0 0.0
    %124 = vmatpush2.msra.mxu0 0.0
    %125 = vmatprep.subr.mxu0 0.0
    %126 = vmatpush2.msra.mxu0 0.0
    %127 = vmatprep.subr.mxu0 0.0
    %128 = vmatpush2.msra.mxu0 0.0
    %129 = vmatprep.subr.mxu0 0.0
    %130 = vmatpush2.msra.mxu0 0.0
    %131 = vmatprep.subr.mxu0 0.0
    %132 = vmatpush2.msra.mxu0 0.0
    %133 = vmatprep.subr.mxu0 0.0
    %134 = vmatpush2.msra.mxu0 0.0
    %135 = vmatprep.subr.mxu0 0.0
    %136 = vmatpush2.msra.mxu0 0.0
    %137 = vmatprep.subr.mxu0 0.0
    %138 = vmatpush2.msra.mxu0 0.0
    %139 = vmatprep.subr.mxu0 0.0
    %140 = vmatpush2.msra.mxu0 0.0
    %141 = vmatprep.subr.mxu0 0.0
    %142 = vmatpush2.msra.mxu0 0.0
    %143 = vmatprep.subr.mxu0 0.0
    %144 = vmatpush2.msra.mxu0 0.0
    %145 = vmatprep.mubr.f32.mxu0 0.0
    %146 = vmatmul.mubr.f32.gmra.mxu0 %v79
    %v147 = vpop.f32.mrf.mxu0
    %v148 = vadd.f32 0.0, %v147
    %v149 = vpop.f32.mrf.mxu0
    %150 = vdwg.mxu0
    %vm151 = vcmask 31744
    %v152 = vsel %vm151, %v148, -inf
    %153 = vmax.xlane.f32.xlu0 %v152
    %v154 = vpop.xlane.xlu0 %153
    %v155 = vlaneseq
    %v156 = vand.u32 %v155, 127
    %vm157 = vcmp.ge.f32.partialorder %v148, %v154
    %v158 = vsel %vm157, %v156, 4
    %v159 = vsel %vm151, %v158, 2147483647
    %v160 = vand.u32 %v159, 65535
    %v161 = vshra.s32 %v159, 16
    %v162 = vcvt.s32.f32 %v160
    %v163 = vcvt.s32.f32 %v161
    %164 = vmin.xlane.f32.xlu0 %v163
    %v165 = vpop.xlane.xlu0 %164
    %vm166 = vcmp.eq.f32.partialorder %v163, %v165
    %v167 = vsel %vm166, %v162, inf
    %168 = vmin.xlane.f32.xlu0 %v167
    %v169 = vpop.xlane.xlu0 %168
    %v170 = vcvt.f32.s32 %v169
    %v171 = vcvt.f32.s32 %v165
    %v172 = vshll.u32 %v171, 16
    %v173 = vadd.s32 %v172, %v170
    %vm174 = vcmask 7168
    %175 = vst.msk [vmem:[%s9] sm:$0xff] %vm174, %v173
    %v176 = vshra.s32 %v156, 3
    %vm177 = vcmp.eq.s32.totalorder %v176, %v173
    %v178 = vsel %vm177, 1, 0
    %v179 = vcvt.s32.f32 %v178
    %v180 = vmul.f32 %v71, %v179
    %v181 = vld [vmem:[%s2] sm:$0xff]
    %v182 = vld [vmem:[%s2 + $0x8] sm:$0xff]
    %v183 = vld [vmem:[%s2 + $0x10] sm:$0xff]
    %v184 = vld [vmem:[%s2 + $0x18] sm:$0xff]
    %v185 = vld [vmem:[%s3] sm:$0x1]
    %v187 = vlaneseq
    %v188 = vshrl.u32 %v187, 7
    %v189 = vsub.s32 0, %v188
    %v190 = vrot.slane %v185, %v189
    %v193 = vsel %vm77, %v180, 0
    %195 = vmatprep.subr.mxu0 0.0
    %196 = vmatpush1.msra.mxu0 0.0
    %197 = vmatprep.subr.mxu0 0.0
    %198 = vmatpush1.msra.mxu0 0.0
    %199 = vmatprep.subr.mxu0 0.0
    %200 = vmatpush1.msra.mxu0 0.0
    %201 = vmatprep.subr.mxu0 0.0
    %202 = vmatpush1.msra.mxu0 0.0
    %203 = vmatprep.subr.mxu0 0.0
    %204 = vmatpush1.msra.mxu0 0.0
    %205 = vmatprep.subr.mxu0 0.0
    %206 = vmatpush1.msra.mxu0 0.0
    %207 = vmatprep.subr.mxu0 0.0
    %208 = vmatpush1.msra.mxu0 0.0
    %209 = vmatprep.subr.mxu0 0.0
    %210 = vmatpush1.msra.mxu0 0.0
    %211 = vmatprep.subr.mxu0 0.0
    %212 = vmatpush1.msra.mxu0 0.0
    %213 = vmatprep.subr.mxu0 0.0
    %214 = vmatpush1.msra.mxu0 0.0
    %215 = vmatprep.subr.mxu0 0.0
    %216 = vmatpush1.msra.mxu0 0.0
    %217 = vmatprep.subr.mxu0 0.0
    %218 = vmatpush1.msra.mxu0 0.0
    %219 = vmatprep.subr.mxu0 0.0
    %220 = vmatpush1.msra.mxu0 %v184
    %221 = vmatprep.subr.mxu0 0.0
    %222 = vmatpush1.msra.mxu0 %v183
    %223 = vmatprep.subr.mxu0 0.0
    %224 = vmatpush1.msra.mxu0 %v182
    %225 = vmatprep.subr.mxu0 0.0
    %226 = vmatpush1.msra.mxu0 %v181
    %227 = vmatprep.subr.mxu0 0.0
    %228 = vmatpush2.msra.mxu0 0.0
    %229 = vmatprep.subr.mxu0 0.0
    %230 = vmatpush2.msra.mxu0 0.0
    %231 = vmatprep.subr.mxu0 0.0
    %232 = vmatpush2.msra.mxu0 0.0
    %233 = vmatprep.subr.mxu0 0.0
    %234 = vmatpush2.msra.mxu0 0.0
    %235 = vmatprep.subr.mxu0 0.0
    %236 = vmatpush2.msra.mxu0 0.0
    %237 = vmatprep.subr.mxu0 0.0
    %238 = vmatpush2.msra.mxu0 0.0
    %239 = vmatprep.subr.mxu0 0.0
    %240 = vmatpush2.msra.mxu0 0.0
    %241 = vmatprep.subr.mxu0 0.0
    %242 = vmatpush2.msra.mxu0 0.0
    %243 = vmatprep.subr.mxu0 0.0
    %244 = vmatpush2.msra.mxu0 0.0
    %245 = vmatprep.subr.mxu0 0.0
    %246 = vmatpush2.msra.mxu0 0.0
    %247 = vmatprep.subr.mxu0 0.0
    %248 = vmatpush2.msra.mxu0 0.0
    %249 = vmatprep.subr.mxu0 0.0
    %250 = vmatpush2.msra.mxu0 0.0
    %251 = vmatprep.subr.mxu0 0.0
    %252 = vmatpush2.msra.mxu0 0.0
    %253 = vmatprep.subr.mxu0 0.0
    %254 = vmatpush2.msra.mxu0 0.0
    %255 = vmatprep.subr.mxu0 0.0
    %256 = vmatpush2.msra.mxu0 0.0
    %257 = vmatprep.subr.mxu0 0.0
    %258 = vmatpush2.msra.mxu0 0.0
    %259 = vmatprep.mubr.f32.mxu0 0.0
    %260 = vmatmul.mubr.f32.gmra.mxu0 %v193
    %v261 = vpop.f32.mrf.mxu0
    %v262 = vadd.f32 %v190, %v261
    %v263 = vpop.f32.mrf.mxu0
    %264 = vdwg.mxu0
    %v265 = vmax.f32 %v262, 0.0
    %v266 = vld [vmem:[#allocation5] sm:$0xff]
    %v267 = vld [vmem:[#allocation5 + $0x8] sm:$0xff]
    %v268 = vld [vmem:[#allocation5 + $0x10] sm:$0xff]
    %v269 = vld [vmem:[#allocation5 + $0x18] sm:$0xff]
    %v270 = vld [vmem:[#allocation5 + $0x20] sm:$0xff]
    %v271 = vld [vmem:[#allocation5 + $0x28] sm:$0xff]
    %v272 = vld [vmem:[#allocation5 + $0x30] sm:$0xff]
    %v273 = vld [vmem:[#allocation5 + $0x38] sm:$0xff]
    %v274 = vld [vmem:[#allocation5 + $0x40] sm:$0xff]
    %v275 = vld [vmem:[#allocation5 + $0x48] sm:$0xff]
    %v276 = vld [vmem:[#allocation5 + $0x50] sm:$0xff]
    %v277 = vld [vmem:[#allocation5 + $0x58] sm:$0xff]
    %v278 = vld [vmem:[#allocation5 + $0x60] sm:$0xff]
    %v279 = vld [vmem:[#allocation5 + $0x68] sm:$0xff]
    %v280 = vld [vmem:[#allocation5 + $0x70] sm:$0xff]
    %v281 = vld [vmem:[#allocation5 + $0x78] sm:$0xff]
    %v282 = vld [vmem:[%s5] sm:$0x1]
    %v284 = vlaneseq
    %v285 = vshrl.u32 %v284, 7
    %v286 = vsub.s32 0, %v285
    %v287 = vrot.slane %v282, %v286
    %289 = vmatprep.subr.mxu0 0.0
    %290 = vmatpush1.msra.mxu0 %v281
    %291 = vmatprep.subr.mxu0 0.0
    %292 = vmatpush1.msra.mxu0 %v280
    %293 = vmatprep.subr.mxu0 0.0
    %294 = vmatpush1.msra.mxu0 %v279
    %295 = vmatprep.subr.mxu0 0.0
    %296 = vmatpush1.msra.mxu0 %v278
    %297 = vmatprep.subr.mxu0 0.0
    %298 = vmatpush1.msra.mxu0 %v277
    %299 = vmatprep.subr.mxu0 0.0
    %300 = vmatpush1.msra.mxu0 %v276
    %301 = vmatprep.subr.mxu0 0.0
    %302 = vmatpush1.msra.mxu0 %v275
    %303 = vmatprep.subr.mxu0 0.0
    %304 = vmatpush1.msra.mxu0 %v274
    %305 = vmatprep.subr.mxu0 0.0
    %306 = vmatpush1.msra.mxu0 %v273
    %307 = vmatprep.subr.mxu0 0.0
    %308 = vmatpush1.msra.mxu0 %v272
    %309 = vmatprep.subr.mxu0 0.0
    %310 = vmatpush1.msra.mxu0 %v271
    %311 = vmatprep.subr.mxu0 0.0
    %312 = vmatpush1.msra.mxu0 %v270
    %313 = vmatprep.subr.mxu0 0.0
    %314 = vmatpush1.msra.mxu0 %v269
    %315 = vmatprep.subr.mxu0 0.0
    %316 = vmatpush1.msra.mxu0 %v268
    %317 = vmatprep.subr.mxu0 0.0
    %318 = vmatpush1.msra.mxu0 %v267
    %319 = vmatprep.subr.mxu0 0.0
    %320 = vmatpush1.msra.mxu0 %v266
    %321 = vmatprep.subr.mxu0 0.0
    %322 = vmatpush2.msra.mxu0 0.0
    %323 = vmatprep.subr.mxu0 0.0
    %324 = vmatpush2.msra.mxu0 0.0
    %325 = vmatprep.subr.mxu0 0.0
    %326 = vmatpush2.msra.mxu0 0.0
    %327 = vmatprep.subr.mxu0 0.0
    %328 = vmatpush2.msra.mxu0 0.0
    %329 = vmatprep.subr.mxu0 0.0
    %330 = vmatpush2.msra.mxu0 0.0
    %331 = vmatprep.subr.mxu0 0.0
    %332 = vmatpush2.msra.mxu0 0.0
    %333 = vmatprep.subr.mxu0 0.0
    %334 = vmatpush2.msra.mxu0 0.0
    %335 = vmatprep.subr.mxu0 0.0
    %336 = vmatpush2.msra.mxu0 0.0
    %337 = vmatprep.subr.mxu0 0.0
    %338 = vmatpush2.msra.mxu0 0.0
    %339 = vmatprep.subr.mxu0 0.0
    %340 = vmatpush2.msra.mxu0 0.0
    %341 = vmatprep.subr.mxu0 0.0
    %342 = vmatpush2.msra.mxu0 0.0
    %343 = vmatprep.subr.mxu0 0.0
    %344 = vmatpush2.msra.mxu0 0.0
    %345 = vmatprep.subr.mxu0 0.0
    %346 = vmatpush2.msra.mxu0 0.0
    %347 = vmatprep.subr.mxu0 0.0
    %348 = vmatpush2.msra.mxu0 0.0
    %349 = vmatprep.subr.mxu0 0.0
    %350 = vmatpush2.msra.mxu0 0.0
    %351 = vmatprep.subr.mxu0 0.0
    %352 = vmatpush2.msra.mxu0 0.0
    %353 = vmatprep.mubr.f32.mxu0 0.0
    %354 = vmatmul.mubr.f32.gmra.mxu0 %v265
    %v355 = vpop.f32.mrf.mxu0
    %v356 = vadd.f32 %v287, %v355
    %v357 = vpop.f32.mrf.mxu0
    %358 = vdwg.mxu0
    %v359 = vmax.f32 %v356, 0.0
    %v360 = vld [vmem:[#allocation7] sm:$0xff]
    %v361 = vld [vmem:[#allocation7 + $0x8] sm:$0xff]
    %v362 = vld [vmem:[#allocation7 + $0x10] sm:$0xff]
    %v363 = vld [vmem:[#allocation7 + $0x18] sm:$0xff]
    %v364 = vld [vmem:[#allocation7 + $0x20] sm:$0xff]
    %v365 = vld [vmem:[#allocation7 + $0x28] sm:$0xff]
    %v366 = vld [vmem:[#allocation7 + $0x30] sm:$0xff]
    %v367 = vld [vmem:[#allocation7 + $0x38] sm:$0xff]
    %v368 = vld [vmem:[#allocation7 + $0x40] sm:$0xff]
    %v369 = vld [vmem:[#allocation7 + $0x48] sm:$0xff]
    %v370 = vld [vmem:[#allocation7 + $0x50] sm:$0xff]
    %v371 = vld [vmem:[#allocation7 + $0x58] sm:$0xff]
    %v372 = vld [vmem:[#allocation7 + $0x60] sm:$0xff]
    %v373 = vld [vmem:[#allocation7 + $0x68] sm:$0xff]
    %v374 = vld [vmem:[#allocation7 + $0x70] sm:$0xff]
    %v375 = vld [vmem:[#allocation7 + $0x78] sm:$0xff]
    %v376 = vld [vmem:[#allocation7 + $0x80] sm:$0xff]
    %v377 = vld [vmem:[#allocation7 + $0x88] sm:$0xff]
    %v378 = vld [vmem:[#allocation7 + $0x90] sm:$0xff]
    %v379 = vld [vmem:[#allocation7 + $0x98] sm:$0xff]
    %v380 = vld [vmem:[#allocation7 + $0xa0] sm:$0xff]
    %v381 = vld [vmem:[#allocation7 + $0xa8] sm:$0xff]
    %v382 = vld [vmem:[#allocation7 + $0xb0] sm:$0xff]
    %v383 = vld [vmem:[#allocation7 + $0xb8] sm:$0xff]
    %v384 = vld [vmem:[#allocation7 + $0xc0] sm:$0xff]
    %v385 = vld [vmem:[#allocation7 + $0xc8] sm:$0xff]
    %v386 = vld [vmem:[#allocation7 + $0xd0] sm:$0xff]
    %v387 = vld [vmem:[#allocation7 + $0xd8] sm:$0xff]
    %v388 = vld [vmem:[#allocation7 + $0xe0] sm:$0xff]
    %v389 = vld [vmem:[#allocation7 + $0xe8] sm:$0xff]
    %v390 = vld [vmem:[#allocation7 + $0xf0] sm:$0xff]
    %v391 = vld [vmem:[#allocation7 + $0xf8] sm:$0xff]
    %v392 = vld [vmem:[%s7] sm:$0x3]
    %v394 = vlaneseq
    %v395 = vshrl.u32 %v394, 7
    %v396 = vsub.s32 0, %v395
    %v397 = vrot.slane %v392, %v396
    %v398 = vlaneseq
    %v399 = vshrl.u32 %v398, 7
    %v400 = vsub.s32 1, %v399
    %v401 = vrot.slane %v392, %v400
    %404 = vmatprep.subr.mxu0 %v391
    %405 = vmatpush1.msra.mxu0 %v390
    %406 = vmatprep.subr.mxu0 %v389
    %407 = vmatpush1.msra.mxu0 %v388
    %408 = vmatprep.subr.mxu0 %v387
    %409 = vmatpush1.msra.mxu0 %v386
    %410 = vmatprep.subr.mxu0 %v385
    %411 = vmatpush1.msra.mxu0 %v384
    %412 = vmatprep.subr.mxu0 %v383
    %413 = vmatpush1.msra.mxu0 %v382
    %414 = vmatprep.subr.mxu0 %v381
    %415 = vmatpush1.msra.mxu0 %v380
    %416 = vmatprep.subr.mxu0 %v379
    %417 = vmatpush1.msra.mxu0 %v378
    %418 = vmatprep.subr.mxu0 %v377
    %419 = vmatpush1.msra.mxu0 %v376
    %420 = vmatprep.subr.mxu0 %v375
    %421 = vmatpush1.msra.mxu0 %v374
    %422 = vmatprep.subr.mxu0 %v373
    %423 = vmatpush1.msra.mxu0 %v372
    %424 = vmatprep.subr.mxu0 %v371
    %425 = vmatpush1.msra.mxu0 %v370
    %426 = vmatprep.subr.mxu0 %v369
    %427 = vmatpush1.msra.mxu0 %v368
    %428 = vmatprep.subr.mxu0 %v367
    %429 = vmatpush1.msra.mxu0 %v366
    %430 = vmatprep.subr.mxu0 %v365
    %431 = vmatpush1.msra.mxu0 %v364
    %432 = vmatprep.subr.mxu0 %v363
    %433 = vmatpush1.msra.mxu0 %v362
    %434 = vmatprep.subr.mxu0 %v361
    %435 = vmatpush1.msra.mxu0 %v360
    %436 = vmatprep.subr.mxu0 0.0
    %437 = vmatpush2.msra.mxu0 0.0
    %438 = vmatprep.subr.mxu0 0.0
    %439 = vmatpush2.msra.mxu0 0.0
    %440 = vmatprep.subr.mxu0 0.0
    %441 = vmatpush2.msra.mxu0 0.0
    %442 = vmatprep.subr.mxu0 0.0
    %443 = vmatpush2.msra.mxu0 0.0
    %444 = vmatprep.subr.mxu0 0.0
    %445 = vmatpush2.msra.mxu0 0.0
    %446 = vmatprep.subr.mxu0 0.0
    %447 = vmatpush2.msra.mxu0 0.0
    %448 = vmatprep.subr.mxu0 0.0
    %449 = vmatpush2.msra.mxu0 0.0
    %450 = vmatprep.subr.mxu0 0.0
    %451 = vmatpush2.msra.mxu0 0.0
    %452 = vmatprep.subr.mxu0 0.0
    %453 = vmatpush2.msra.mxu0 0.0
    %454 = vmatprep.subr.mxu0 0.0
    %455 = vmatpush2.msra.mxu0 0.0
    %456 = vmatprep.subr.mxu0 0.0
    %457 = vmatpush2.msra.mxu0 0.0
    %458 = vmatprep.subr.mxu0 0.0
    %459 = vmatpush2.msra.mxu0 0.0
    %460 = vmatprep.subr.mxu0 0.0
    %461 = vmatpush2.msra.mxu0 0.0
    %462 = vmatprep.subr.mxu0 0.0
    %463 = vmatpush2.msra.mxu0 0.0
    %464 = vmatprep.subr.mxu0 0.0
    %465 = vmatpush2.msra.mxu0 0.0
    %466 = vmatprep.subr.mxu0 0.0
    %467 = vmatpush2.msra.mxu0 0.0
    %468 = vmatprep.mubr.f32.mxu0 0.0
    %469 = vmatmul.mubr.f32.gmra.mxu0 %v359
    %v470 = vpop.f32.mrf.mxu0
    %v471 = vadd.f32 %v397, %v470
    %v472 = vpop.f32.mrf.mxu0
    %v473 = vadd.f32 %v401, %v472
    %474 = vdwg.mxu0
    %v475 = vxor.u32 %v471, 2147483648
    %v476 = vxor.u32 %v473, 2147483648
    %v477 = vmul.f32 %v475, 1.442695
    %v478 = vpow.pop %v477
    %v479 = vmul.f32 %v476, 1.442695
    %v480 = vpow.pop %v479
    %v481 = vadd.f32 %v478, 1.0
    %v482 = vadd.f32 %v480, 1.0
    %v483 = vrcp.pop %v481
    %v484 = vmul.f32 1.0, %v483
    %v485 = vrcp.pop %v482
    %v486 = vmul.f32 1.0, %v485
    %487 = vst [vmem:[#allocation8] sm:$0xff] %v484
    %488 = vst [vmem:[#allocation8 + $0x8] sm:$0xff] %v486
    // Predicated region
    $region46: #{tpu_custom_call.1} parent=1 // pred_check
      _
    $region47: #{tpu_custom_call.1} parent=1 // pred_check_branch
      %490 = sbr.rel (0) target = $region49
    $region48: #{tpu_custom_call.1} parent=1 // pred_region
      %s492 = ssub.s32 256, 256
      %493 = vsyncadd [#allocation4], %s492
      %s495 = sshll.u32 [#allocation8], 4
      %s496 = int_to_ptr.vmem [resolvable:$true] %s495
      %498 = dma.vmem_to_hbm [thread:$0]  %s496, 256, %s8, [#allocation4]
    $region49: #{tpu_custom_call.1} parent=1 // pred_fallthru
      _
    // Predicated region
    $region50: #{tpu_custom_call.1} parent=1 // pred_check
      _
    $region51: #{tpu_custom_call.1} parent=1 // pred_check_branch
      %500 = sbr.rel (0) target = $region53
    $region52: #{tpu_custom_call.1} parent=1 // pred_region
      _
    $region53: #{tpu_custom_call.1} parent=1 // pred_fallthru
      _
    // Predicated region
    $region54: #{tpu_custom_call.1} parent=1 // pred_check
      _
    $region55: #{tpu_custom_call.1} parent=1 // pred_check_branch
      %502 = sbr.rel (0) target = $region57
    $region56: #{tpu_custom_call.1} parent=1 // pred_region
      %503 = dma.done [#allocation4], 256
    $region57: #{tpu_custom_call.1} parent=1 // pred_fallthru
      _
    // Predicated region
    $region58: #{tpu_custom_call.1} parent=1 // pred_check
      _
    $region59: #{tpu_custom_call.1} parent=1 // pred_check_branch
      %505 = sbr.rel (0) target = $region61
    $region60: #{tpu_custom_call.1} parent=1 // pred_region
      _
    $region61: #{tpu_custom_call.1} parent=1 // pred_fallthru
      _
    %506 = vsyncpa [#allocation3], 1
    %507 = vsyncpa [#allocation6], 1
    %508 = vsyncpa [#allocation4], 1

</llo_original>
